<compile_context>
chip_gen: v7x
topology: tpu7x:2x2x1
jax: 0.10.0
libtpu: 0.0.40
codegen_flags: <defaults>
</compile_context>

<pallas_src>
import jax
import jax.numpy as jnp
from jax.experimental import pallas as pl
from jax.experimental.pallas import tpu as pltpu

# ---- small, module-consistent dimensions -------------------------------------
B = 2              # batch
C_IMG = 4          # image channels fed to CNN backbone (NCHW)
H = W = 16         # spatial
C_VIT = 4          # vit pixel_values channels
HV = WV = 16       # vit pixel_values spatial
FEATURE_DIM = 128  # proxy for resnet18's 512 / efficientnet's 1280
VIT_DIM = 64       # proxy for ViT hidden size (768)
LBP_DIM = 32       # LBP texture histogram dim
HIDDEN = 512       # classifier hidden width (as in the module)
NUM_CLASSES = 10
N_PAD = 128        # lane-dense padded logits width

# aux (bf16) lane layout: [ lbp(32) | gap_vit(4) | 1.0 bias lane | gap_img(4) | zeros ]
AUX_W = 64
LBP_OFF = 0
VIT_OFF = LBP_OFF + LBP_DIM          # 32
BIAS_LANE = VIT_OFF + C_VIT          # 36  (shared bias lane: b1_eff in w1, bc in small)
GAP_OFF = BIAS_LANE                  # cnn input = aux[:, 36:41] = [1.0 | gap_img]
K_PACK = FEATURE_DIM + AUX_W         # 192 packed classifier-L1 depth (trimmed from 256)


def hybrid_kernel(aux_ref, small_ref, w1_ref, w2_ref, out_ref):
    aux = aux_ref[...]                                        # (b_pad, AUX_W) bf16
    small = small_ref[...]                                    # (6, 128) f32

    # --- CNN backbone proxy: [1 | gap_img] @ [bc ; wc] -> ReLU (bias via 1.0 lane) ---
    cnn_in = aux[:, GAP_OFF:GAP_OFF + 1 + C_IMG]              # (b_pad, 5) bf16
    wc = small[:1 + C_IMG].astype(jnp.bfloat16)               # (5, FEATURE_DIM) bf16
    cnn_feat = jnp.maximum(
        jnp.dot(cnn_in, wc, preferred_element_type=jnp.float32), 0.0)

    # --- classifier Linear-1 as two accumulating dots (no VMEM scratch round trip) ---
    # concat([cnn_feat, vit_out, lbp]) @ W1 + b1 is realized by the host-packed w1:
    #   rows   0:128 -> w1c ; rows 128:160 -> w1l ; rows 160:164 -> wv@w1v ;
    #   row   164    -> b1 + bv@w1v (hits the 1.0 bias lane) ; rest zero.
    h = jnp.maximum(
        jnp.dot(cnn_feat.astype(jnp.bfloat16), w1_ref[:FEATURE_DIM, :],
                preferred_element_type=jnp.float32)
        + jnp.dot(aux, w1_ref[FEATURE_DIM:, :],
                  preferred_element_type=jnp.float32),
        0.0)                                                  # (b_pad, HIDDEN) f32
    # Dropout(0.5): identity at inference/eval time.

    # --- classifier Linear-2 (lane-dense, N padded to 128) + bias ---
    out_ref[...] = (jnp.dot(h.astype(jnp.bfloat16), w2_ref[...],
                            preferred_element_type=jnp.float32)
                    + small[1 + C_IMG:2 + C_IMG, :])          # (b_pad, N_PAD) f32


def pack_params(p):
    """Host-side exact re-packing of the logical module parameters."""
    # Fold the (purely linear, frozen) ViT proxy into classifier L1:
    #   vit_out @ w1v = gap_vit @ (wv @ w1v) + (bv @ w1v)
    w1v_eff = p["wv"] @ p["w1v"]                               # (C_VIT, HIDDEN)
    b1_eff = p["b1"] + p["bv"] @ p["w1v"]                      # (1, HIDDEN)

    # Packed classifier-L1 weight over the [cnn_feat(128) | aux(64)] layout.
    w1 = jnp.zeros((K_PACK, HIDDEN), jnp.float32)
    w1 = w1.at[:FEATURE_DIM].set(p["w1c"])
    w1 = w1.at[FEATURE_DIM + LBP_OFF:FEATURE_DIM + LBP_OFF + LBP_DIM].set(p["w1l"])
    w1 = w1.at[FEATURE_DIM + VIT_OFF:FEATURE_DIM + VIT_OFF + C_VIT].set(w1v_eff)
    w1 = w1.at[FEATURE_DIM + BIAS_LANE].set(b1_eff[0])
    # gap_img lanes (rows 165:169) stay zero: they feed only the CNN proxy.

    # Small f32 constants, stacked into one ref: row 0 = bc, rows 1:5 = wc, row 5 = b2.
    small = jnp.zeros((C_IMG + 2, FEATURE_DIM), jnp.float32)
    small = small.at[0].set(p["bc"][0])
    small = small.at[1:1 + C_IMG].set(p["wc"])
    small = small.at[1 + C_IMG, :NUM_CLASSES].set(p["b2"][0])

    # Lane-dense classifier-L2: pad NUM_CLASSES -> N_PAD.
    w2 = jnp.zeros((HIDDEN, N_PAD), jnp.float32).at[:, :NUM_CLASSES].set(p["w2"])

    return {
        "small": small,                      # f32 (tiny)
        "w1": w1.astype(jnp.bfloat16),       # bf16 halves HBM->VMEM weight traffic
        "w2": w2.astype(jnp.bfloat16),
    }


def hybridnet_forward(img_nchw, vit_pixel_values, lbp_feat, packed):
    """Wrapper: GAP + lane packing + batch pad on host, fused Pallas kernel for the rest."""
    b = img_nchw.shape[0]
    # Pad batch to a full bf16 sublane tile (16). A larger serving batch simply raises
    # b_pad, amortizing the fixed weight-DMA / launch overhead of this call.
    b_pad = max(16, ((b + 15) // 16) * 16)

    # GAP done host-side (fuses with the packing in XLA); kernel stays pure MXU/VPU work.
    gap_img = jnp.mean(img_nchw.astype(jnp.float32), axis=(2, 3))          # (B, C_IMG)
    gap_vit = jnp.mean(vit_pixel_values.astype(jnp.float32), axis=(2, 3))  # (B, C_VIT)

    # Single packed activation row: [lbp | gap_vit | 1.0 | gap_img | zeros] -> 64 lanes.
    aux = jnp.zeros((b, AUX_W), jnp.float32)
    aux = aux.at[:, LBP_OFF:LBP_OFF + LBP_DIM].set(lbp_feat.astype(jnp.float32))
    aux = aux.at[:, VIT_OFF:VIT_OFF + C_VIT].set(gap_vit)
    aux = aux.at[:, BIAS_LANE].set(1.0)
    aux = aux.at[:, GAP_OFF + 1:GAP_OFF + 1 + C_IMG].set(gap_img)
    aux = jnp.pad(aux, ((0, b_pad - b), (0, 0))).astype(jnp.bfloat16)      # (b_pad, 64)

    args = (aux, packed["small"], packed["w1"], packed["w2"])

    flops = 2 * b_pad * ((1 + C_IMG) * FEATURE_DIM + K_PACK * HIDDEN + HIDDEN * N_PAD)
    bytes_accessed = int(sum(int(a.size) * a.dtype.itemsize for a in args)
                         + b_pad * N_PAD * 4)

    vmem = pl.BlockSpec(memory_space=pltpu.MemorySpace.VMEM)
    out = pl.pallas_call(
        hybrid_kernel,
        out_shape=jax.ShapeDtypeStruct((b_pad, N_PAD), jnp.float32),
        in_specs=[vmem] * len(args),
        out_specs=vmem,
        cost_estimate=pl.CostEstimate(flops=flops, transcendentals=0,
                                      bytes_accessed=bytes_accessed),
    )(*args)
    return out[:b, :NUM_CLASSES]


def make_params(key):
    ks = jax.random.split(key, 10)

    def w(k, shape, scale):
        return scale * jax.random.normal(k, shape, dtype=jnp.float32)

    return {
        # CNN backbone proxy: Linear(C_IMG -> FEATURE_DIM)
        "wc": w(ks[0], (C_IMG, FEATURE_DIM), 0.1),
        "bc": w(ks[1], (1, FEATURE_DIM), 0.01),
        # ViT proxy: Linear(C_VIT -> VIT_DIM)
        "wv": w(ks[2], (C_VIT, VIT_DIM), 0.1),
        "bv": w(ks[3], (1, VIT_DIM), 0.01),
        # classifier Linear 1, split along the concat axis
        "w1c": w(ks[4], (FEATURE_DIM, HIDDEN), 0.05),
        "w1v": w(ks[5], (VIT_DIM, HIDDEN), 0.05),
        "w1l": w(ks[6], (LBP_DIM, HIDDEN), 0.05),
        "b1": w(ks[7], (1, HIDDEN), 0.01),
        # classifier Linear 2
        "w2": w(ks[8], (HIDDEN, NUM_CLASSES), 0.05),
        "b2": w(ks[9], (1, NUM_CLASSES), 0.01),
    }


def reference_forward(img_nchw, vit_pixel_values, lbp_feat, p):
    """Pure-JAX f32 reference of the same math, in the original module's layout."""
    gap_img = jnp.mean(img_nchw.astype(jnp.float32), axis=(2, 3))
    gap_vit = jnp.mean(vit_pixel_values.astype(jnp.float32), axis=(2, 3))
    cnn_feat = jnp.maximum(gap_img @ p["wc"] + p["bc"], 0.0)
    vit_out = gap_vit @ p["wv"] + p["bv"]
    combined = jnp.concatenate([cnn_feat, vit_out, lbp_feat.astype(jnp.float32)], axis=1)
    w1 = jnp.concatenate([p["w1c"], p["w1v"], p["w1l"]], axis=0)
    h = jnp.maximum(combined @ w1 + p["b1"], 0.0)
    return h @ p["w2"] + p["b2"]


if __name__ == "__main__":
    key = jax.random.PRNGKey(0)
    k_img, k_vit, k_lbp, k_par = jax.random.split(key, 4)

    img_tensor = jax.random.normal(k_img, (B, C_IMG, H, W), dtype=jnp.float32)          # NCHW
    vit_pixel_values = jax.random.normal(k_vit, (B, C_VIT, HV, WV), dtype=jnp.float32)  # NCHW
    lbp_feat = jax.random.uniform(k_lbp, (B, LBP_DIM), dtype=jnp.float32)

    params = make_params(k_par)
    packed = pack_params(params)

    logits = hybridnet_forward(img_tensor, vit_pixel_values, lbp_feat, packed)
    logits = jax.block_until_ready(logits)

    ref = reference_forward(img_tensor, vit_pixel_values, lbp_feat, params)
    assert logits.shape == (B, NUM_CLASSES)
    # Tolerance loosened vs the pure-f32 reference because activations/weights run
    # through bf16 on the MXU (f32 accumulation).
    assert jnp.allclose(logits, ref, atol=2e-2, rtol=2e-2), "mismatch vs pure-JAX reference"

    print("KERNEL_OK")
</pallas_src>

<mosaic_0001>
module attributes {stable_mosaic.version = 11 : i64} {
  func.func @hybrid_kernel(%arg0: memref<16x64xbf16, #tpu.memory_space<vmem>>, %arg1: memref<6x128xf32, #tpu.memory_space<vmem>>, %arg2: memref<192x512xbf16, #tpu.memory_space<vmem>>, %arg3: memref<512x128xbf16, #tpu.memory_space<vmem>>, %arg4: memref<16x128xf32, #tpu.memory_space<vmem>>) attributes {dimension_semantics = [], scalar_prefetch = 0 : i64, scratch_operands = 0 : i64, tpu.core_type = #tpu.core_type<tc>} {
    %c0 = arith.constant 0 : index
    %c0_0 = arith.constant 0 : index
    %0 = vector.load %arg0[%c0, %c0_0] : memref<16x64xbf16, #tpu.memory_space<vmem>>, vector<16x64xbf16>
    %c0_1 = arith.constant 0 : index
    %c0_2 = arith.constant 0 : index
    %1 = vector.load %arg1[%c0_1, %c0_2] : memref<6x128xf32, #tpu.memory_space<vmem>>, vector<6x128xf32>
    %2 = vector.extract_strided_slice %0 {offsets = [0, 36], sizes = [16, 5], strides = [1, 1]} : vector<16x64xbf16> to vector<16x5xbf16>
    %3 = vector.extract_strided_slice %1 {offsets = [0, 0], sizes = [5, 128], strides = [1, 1]} : vector<6x128xf32> to vector<5x128xf32>
    %4 = arith.truncf %3 : vector<5x128xf32> to vector<5x128xbf16>
    %cst = arith.constant dense<0.000000e+00> : vector<16x128xf32>
    %5 = tpu.matmul %2, %4, %cst {dimension_numbers = #tpu.dot_dimension_numbers<[1], [0], [0], [1], [0, 0, 1, 1], [], []>} : vector<16x5xbf16>, vector<5x128xbf16>, vector<16x128xf32> -> vector<16x128xf32>
    %cst_3 = arith.constant 0.000000e+00 : f32
    %6 = vector.broadcast %cst_3 : f32 to vector<16x128xf32>
    %7 = arith.maximumf %5, %6 : vector<16x128xf32>
    %8 = arith.truncf %7 : vector<16x128xf32> to vector<16x128xbf16>
    %c0_4 = arith.constant 0 : index
    %c0_5 = arith.constant 0 : index
    %9 = vector.load %arg2[%c0_4, %c0_5] : memref<192x512xbf16, #tpu.memory_space<vmem>>, vector<128x512xbf16>
    %cst_6 = arith.constant dense<0.000000e+00> : vector<16x512xf32>
    %10 = tpu.matmul %8, %9, %cst_6 {dimension_numbers = #tpu.dot_dimension_numbers<[1], [0], [0], [1], [0, 0, 1, 1], [], []>} : vector<16x128xbf16>, vector<128x512xbf16>, vector<16x512xf32> -> vector<16x512xf32>
    %c128 = arith.constant 128 : index
    %c0_7 = arith.constant 0 : index
    %11 = vector.load %arg2[%c128, %c0_7] : memref<192x512xbf16, #tpu.memory_space<vmem>>, vector<64x512xbf16>
    %cst_8 = arith.constant dense<0.000000e+00> : vector<16x512xf32>
    %12 = tpu.matmul %0, %11, %cst_8 {dimension_numbers = #tpu.dot_dimension_numbers<[1], [0], [0], [1], [0, 0, 1, 1], [], []>} : vector<16x64xbf16>, vector<64x512xbf16>, vector<16x512xf32> -> vector<16x512xf32>
    %13 = arith.addf %10, %12 : vector<16x512xf32>
    %cst_9 = arith.constant 0.000000e+00 : f32
    %14 = vector.broadcast %cst_9 : f32 to vector<16x512xf32>
    %15 = arith.maximumf %13, %14 : vector<16x512xf32>
    %16 = arith.truncf %15 : vector<16x512xf32> to vector<16x512xbf16>
    %c0_10 = arith.constant 0 : index
    %c0_11 = arith.constant 0 : index
    %17 = vector.load %arg3[%c0_10, %c0_11] : memref<512x128xbf16, #tpu.memory_space<vmem>>, vector<512x128xbf16>
    %cst_12 = arith.constant dense<0.000000e+00> : vector<16x128xf32>
    %18 = tpu.matmul %16, %17, %cst_12 {dimension_numbers = #tpu.dot_dimension_numbers<[1], [0], [0], [1], [0, 0, 1, 1], [], []>} : vector<16x512xbf16>, vector<512x128xbf16>, vector<16x128xf32> -> vector<16x128xf32>
    %19 = vector.extract_strided_slice %1 {offsets = [5, 0], sizes = [1, 128], strides = [1, 1]} : vector<6x128xf32> to vector<1x128xf32>
    %20 = vector.broadcast %19 : vector<1x128xf32> to vector<16x128xf32>
    %21 = arith.addf %18, %20 : vector<16x128xf32>
    %c0_13 = arith.constant 0 : index
    %c0_14 = arith.constant 0 : index
    %22 = vector.load %arg4[%c0_13, %c0_14] : memref<16x128xf32, #tpu.memory_space<vmem>>, vector<16x128xf32>
    tpu.vector_store %arg4[%c0_13, %c0_14], %21 {strides = array<i32>} : memref<16x128xf32, #tpu.memory_space<vmem>>, vector<16x128xf32>,
    return
  }
}

</mosaic_0001>

<llo_original>
// kernel: tpu_custom_call.1
$region0: #{tpu_custom_call.1}
  #allocation0 [shape = 'u32[]', space=smem, size = 0x4, offset = 0x4, fixed_abs, tag = 'smem constant byte address 0x4 - core index']
  #allocation1 [shape = 'u32[144,128]{1,0:T(1,128)}', space=vmem, size = 0x12000, scoped, tag = 'internal scratch']
  %s0 = inlined_call_operand.hbm [shape: bf16[16,64], index: 0, kind: input, shape index: {}]
  %s1 = inlined_call_operand.hbm [shape: f32[6,128], index: 1, kind: input, shape index: {}]
  %s2 = inlined_call_operand.hbm [shape: bf16[192,512], index: 2, kind: input, shape index: {}]
  %s3 = inlined_call_operand.hbm [shape: bf16[512,128], index: 3, kind: input, shape index: {}]
  %s4 = inlined_call_operand.hbm [shape: f32[16,128], index: 4, kind: output, shape index: {}]
  %s5 = sld [smem:[#allocation0]]
  $region42: #{tpu_custom_call.1} parent=0
    _
  %s7 = ssub.s32 1, %s5
  %s8 = scalar_select 0, %s7, %s5
  $region1: #{tpu_custom_call.1} parent=0
    #allocation2 [shape = 'u8[4096]{0}', space=vmem, size = 0x1000, scoped, tag = 'input window, operand 0, single buffered']
    #allocation3 [shape = 's32[1]{0}', space=sflag, size = 0x4, scoped, tag = 'scoped memory for tpu_custom_call.1']
    #allocation4 [shape = 's32[1]{0}', space=sflag, size = 0x4, scoped, tag = 'scoped memory for tpu_custom_call.1']
    #allocation5 [shape = 'u8[4096]{0}', space=vmem, size = 0x1000, scoped, tag = 'input window, operand 1, single buffered']
    #allocation6 [shape = 's32[1]{0}', space=sflag, size = 0x4, scoped, tag = 'scoped memory for tpu_custom_call.1']
    #allocation7 [shape = 'u8[196608]{0}', space=vmem, size = 0x30000, scoped, tag = 'input window, operand 2, single buffered']
    #allocation8 [shape = 'u8[131072]{0}', space=vmem, size = 0x20000, scoped, tag = 'input window, operand 3, single buffered']
    #allocation9 [shape = 's32[1]{0}', space=sflag, size = 0x4, scoped, tag = 'scoped memory for tpu_custom_call.1']
    #allocation10 [shape = 'u8[8192]{0}', space=vmem, size = 0x2000, scoped, tag = 'output window, operand 0, single buffered']
    %9 = vsyncpa [#allocation3], 0
    %10 = vsyncpa [#allocation6], 0
    %11 = vsyncpa [#allocation9], 0
    %12 = vsyncpa [#allocation4], 0
    // Predicated region
    $region2: #{tpu_custom_call.1} parent=1 // pred_check
      _
    $region3: #{tpu_custom_call.1} parent=1 // pred_check_branch
      %14 = sbr.rel (0) target = $region5
    $region4: #{tpu_custom_call.1} parent=1 // pred_region
      %s16 = ssub.s32 128, 128
      %17 = vsyncadd [#allocation3], %s16
      %s18 = sshll.u32 [#allocation2], 4
      %s19 = int_to_ptr.vmem [resolvable:$true] %s18
      %24 = dma.hbm_to_vmem [thread:$0]  %s0, 128, %s19, [#allocation3], 64, 64, 4
    $region5: #{tpu_custom_call.1} parent=1 // pred_fallthru
      _
    // Predicated region
    $region6: #{tpu_custom_call.1} parent=1 // pred_check
      _
    $region7: #{tpu_custom_call.1} parent=1 // pred_check_branch
      %26 = sbr.rel (0) target = $region9
    $region8: #{tpu_custom_call.1} parent=1 // pred_region
      %s28 = ssub.s32 128, 128
      %29 = vsyncadd [#allocation6], %s28
      %s31 = sshll.u32 [#allocation5], 4
      %s32 = int_to_ptr.vmem [resolvable:$true] %s31
      %34 = dma.hbm_to_vmem [thread:$0]  %s1, 128, %s32, [#allocation6]
    $region9: #{tpu_custom_call.1} parent=1 // pred_fallthru
      _
    // Predicated region
    $region10: #{tpu_custom_call.1} parent=1 // pred_check
      _
    $region11: #{tpu_custom_call.1} parent=1 // pred_check_branch
      %36 = sbr.rel (0) target = $region13
    $region12: #{tpu_custom_call.1} parent=1 // pred_region
      %s38 = ssub.s32 6144, 6144
      %39 = vsyncadd [#allocation6], %s38
      %s40 = sshll.u32 [#allocation7], 4
      %s41 = int_to_ptr.vmem [resolvable:$true] %s40
      %46 = dma.hbm_to_vmem [thread:$0]  %s2, 6144, %s41, [#allocation6], 256, 256, 16
    $region13: #{tpu_custom_call.1} parent=1 // pred_fallthru
      _
    // Predicated region
    $region14: #{tpu_custom_call.1} parent=1 // pred_check
      _
    $region15: #{tpu_custom_call.1} parent=1 // pred_check_branch
      %48 = sbr.rel (0) target = $region17
    $region16: #{tpu_custom_call.1} parent=1 // pred_region
      %s50 = ssub.s32 4096, 4096
      %51 = vsyncadd [#allocation9], %s50
      %s52 = sshll.u32 [#allocation8], 4
      %s53 = int_to_ptr.vmem [resolvable:$true] %s52
      %58 = dma.hbm_to_vmem [thread:$0]  %s3, 4096, %s53, [#allocation9], 64, 64, 4
    $region17: #{tpu_custom_call.1} parent=1 // pred_fallthru
      _
    // Predicated region
    $region18: #{tpu_custom_call.1} parent=1 // pred_check
      _
    $region19: #{tpu_custom_call.1} parent=1 // pred_check_branch
      %60 = sbr.rel (0) target = $region21
    $region20: #{tpu_custom_call.1} parent=1 // pred_region
      %61 = dma.done [#allocation3], 128
    $region21: #{tpu_custom_call.1} parent=1 // pred_fallthru
      _
    // Predicated region
    $region22: #{tpu_custom_call.1} parent=1 // pred_check
      _
    $region23: #{tpu_custom_call.1} parent=1 // pred_check_branch
      %63 = sbr.rel (0) target = $region25
    $region24: #{tpu_custom_call.1} parent=1 // pred_region
      %64 = dma.done [#allocation6], 128
    $region25: #{tpu_custom_call.1} parent=1 // pred_fallthru
      _
    // Predicated region
    $region26: #{tpu_custom_call.1} parent=1 // pred_check
      _
    $region27: #{tpu_custom_call.1} parent=1 // pred_check_branch
      %66 = sbr.rel (0) target = $region29
    $region28: #{tpu_custom_call.1} parent=1 // pred_region
      %67 = dma.done [#allocation6], 6144
    $region29: #{tpu_custom_call.1} parent=1 // pred_fallthru
      _
    // Predicated region
    $region30: #{tpu_custom_call.1} parent=1 // pred_check
      _
    $region31: #{tpu_custom_call.1} parent=1 // pred_check_branch
      %69 = sbr.rel (0) target = $region33
    $region32: #{tpu_custom_call.1} parent=1 // pred_region
      %70 = dma.done [#allocation9], 4096
    $region33: #{tpu_custom_call.1} parent=1 // pred_fallthru
      _
    %v72 = vld [vmem:[#allocation2] sm:$0xf]
    %v73 = vld [vmem:[#allocation2 + $0x4] sm:$0xf]
    %v74 = vld [vmem:[#allocation5] sm:$0x3f]
    %v75 = vpack.c.bf16 %v74, %v74
    %v78 = vunpack.c.l.b16 %v72
    %v79 = vunpack.c.l.b16 %v73
    %v80 = vpack.c.b16 %v79, %v78
    %81 = vrot.lane.b32.xlu0 %v80, 92
    %v82 = vpop.permute.xlu0 %81
    %vm83 = vcmask 39936
    %v85 = vsel %vm83, %v82, 0
    %vm87 = vcmask 1041408
    %vm88 = vcmask 1042432
    %v89 = vsel %vm87, 4294967295, 65535
    %v90 = vsel %vm88, %v89, 0
    %v92 = vand.u32 %v75, %v90
    %94 = vmatprep.subr.bf16.mxu0 0
    %95 = vmatpush1.bf16.msra.mxu0 %v92
    %96 = vmatprep.subr.bf16.mxu0 0
    %97 = vmatpush1.bf16.msra.mxu0 0
    %98 = vmatprep.subr.bf16.mxu0 0
    %99 = vmatpush1.bf16.msra.mxu0 0
    %100 = vmatprep.subr.bf16.mxu0 0
    %101 = vmatpush1.bf16.msra.mxu0 0
    %102 = vmatprep.subr.bf16.mxu0 0
    %103 = vmatpush1.bf16.msra.mxu0 0
    %104 = vmatprep.subr.bf16.mxu0 0
    %105 = vmatpush1.bf16.msra.mxu0 0
    %106 = vmatprep.subr.bf16.mxu0 0
    %107 = vmatpush1.bf16.msra.mxu0 0
    %108 = vmatprep.subr.bf16.mxu0 0
    %109 = vmatpush1.bf16.msra.mxu0 0
    %110 = vmatprep.subr.bf16.mxu0 0
    %111 = vmatpush1.bf16.msra.mxu0 0
    %112 = vmatprep.subr.bf16.mxu0 0
    %113 = vmatpush1.bf16.msra.mxu0 0
    %114 = vmatprep.subr.bf16.mxu0 0
    %115 = vmatpush1.bf16.msra.mxu0 0
    %116 = vmatprep.subr.bf16.mxu0 0
    %117 = vmatpush1.bf16.msra.mxu0 0
    %118 = vmatprep.subr.bf16.mxu0 0
    %119 = vmatpush1.bf16.msra.mxu0 0
    %120 = vmatprep.subr.bf16.mxu0 0
    %121 = vmatpush1.bf16.msra.mxu0 0
    %122 = vmatprep.subr.bf16.mxu0 0
    %123 = vmatpush1.bf16.msra.mxu0 0
    %124 = vmatprep.subr.bf16.mxu0 0
    %125 = vmatpush1.bf16.msra.mxu0 0
    %126 = vmatprep.mubr.bf16.mxu0 0
    %127 = vmatmul.mubr.bf16.gmra.mrb[0].mxu0 %v85
    %v128 = vpop.f32.mrb[0].mxu0
    %v129 = vadd.f32 0.0, %v128
    %v130 = vpop.f32.mrb[0].mxu0
    %v131 = vpop.f32.mrb[0].mxu0
    %v132 = vadd.f32 0.0, %v131
    %v133 = vpop.f32.mrb[0].mxu0
    %134 = vdwg.mxu0
    %v135 = vmax.f32 %v129, 0.0
    %v136 = vmax.f32 %v132, 0.0
    %v137 = vpack.c.bf16 %v136, %v135
    %v138 = vld [vmem:[#allocation7] sm:$0xff]
    %v139 = vld [vmem:[#allocation7 + $0x8] sm:$0xff]
    %v140 = vld [vmem:[#allocation7 + $0x10] sm:$0xff]
    %v141 = vld [vmem:[#allocation7 + $0x18] sm:$0xff]
    %v142 = vld [vmem:[#allocation7 + $0x20] sm:$0xff]
    %v143 = vld [vmem:[#allocation7 + $0x28] sm:$0xff]
    %v144 = vld [vmem:[#allocation7 + $0x30] sm:$0xff]
    %v145 = vld [vmem:[#allocation7 + $0x38] sm:$0xff]
    %v146 = vld [vmem:[#allocation7 + $0x40] sm:$0xff]
    %v147 = vld [vmem:[#allocation7 + $0x48] sm:$0xff]
    %v148 = vld [vmem:[#allocation7 + $0x50] sm:$0xff]
    %v149 = vld [vmem:[#allocation7 + $0x58] sm:$0xff]
    %v150 = vld [vmem:[#allocation7 + $0x60] sm:$0xff]
    %v151 = vld [vmem:[#allocation7 + $0x68] sm:$0xff]
    %v152 = vld [vmem:[#allocation7 + $0x70] sm:$0xff]
    %v153 = vld [vmem:[#allocation7 + $0x78] sm:$0xff]
    %v154 = vld [vmem:[#allocation7 + $0x80] sm:$0xff]
    %v155 = vld [vmem:[#allocation7 + $0x88] sm:$0xff]
    %v156 = vld [vmem:[#allocation7 + $0x90] sm:$0xff]
    %v157 = vld [vmem:[#allocation7 + $0x98] sm:$0xff]
    %v158 = vld [vmem:[#allocation7 + $0xa0] sm:$0xff]
    %v159 = vld [vmem:[#allocation7 + $0xa8] sm:$0xff]
    %v160 = vld [vmem:[#allocation7 + $0xb0] sm:$0xff]
    %v161 = vld [vmem:[#allocation7 + $0xb8] sm:$0xff]
    %v162 = vld [vmem:[#allocation7 + $0xc0] sm:$0xff]
    %v163 = vld [vmem:[#allocation7 + $0xc8] sm:$0xff]
    %v164 = vld [vmem:[#allocation7 + $0xd0] sm:$0xff]
    %v165 = vld [vmem:[#allocation7 + $0xd8] sm:$0xff]
    %v166 = vld [vmem:[#allocation7 + $0xe0] sm:$0xff]
    %v167 = vld [vmem:[#allocation7 + $0xe8] sm:$0xff]
    %v168 = vld [vmem:[#allocation7 + $0xf0] sm:$0xff]
    %v169 = vld [vmem:[#allocation7 + $0xf8] sm:$0xff]
    %v170 = vld [vmem:[#allocation7 + $0x100] sm:$0xff]
    %v171 = vld [vmem:[#allocation7 + $0x108] sm:$0xff]
    %v172 = vld [vmem:[#allocation7 + $0x110] sm:$0xff]
    %v173 = vld [vmem:[#allocation7 + $0x118] sm:$0xff]
    %v174 = vld [vmem:[#allocation7 + $0x120] sm:$0xff]
    %v175 = vld [vmem:[#allocation7 + $0x128] sm:$0xff]
    %v176 = vld [vmem:[#allocation7 + $0x130] sm:$0xff]
    %v177 = vld [vmem:[#allocation7 + $0x138] sm:$0xff]
    %v178 = vld [vmem:[#allocation7 + $0x140] sm:$0xff]
    %v179 = vld [vmem:[#allocation7 + $0x148] sm:$0xff]
    %v180 = vld [vmem:[#allocation7 + $0x150] sm:$0xff]
    %v181 = vld [vmem:[#allocation7 + $0x158] sm:$0xff]
    %v182 = vld [vmem:[#allocation7 + $0x160] sm:$0xff]
    %v183 = vld [vmem:[#allocation7 + $0x168] sm:$0xff]
    %v184 = vld [vmem:[#allocation7 + $0x170] sm:$0xff]
    %v185 = vld [vmem:[#allocation7 + $0x178] sm:$0xff]
    %v202 = vunpack.c.l.b16 %v170
    %v203 = vunpack.c.h.b16 %v170
    %v204 = vunpack.c.l.b16 %v171
    %v205 = vunpack.c.h.b16 %v171
    %v206 = vunpack.c.l.b16 %v172
    %v207 = vunpack.c.h.b16 %v172
    %v208 = vunpack.c.l.b16 %v173
    %v209 = vunpack.c.h.b16 %v173
    %v210 = vunpack.c.l.b16 %v174
    %v211 = vunpack.c.h.b16 %v174
    %v212 = vunpack.c.l.b16 %v175
    %v213 = vunpack.c.h.b16 %v175
    %v214 = vunpack.c.l.b16 %v176
    %v215 = vunpack.c.h.b16 %v176
    %v216 = vunpack.c.l.b16 %v177
    %v217 = vunpack.c.h.b16 %v177
    %v218 = vunpack.c.l.b16 %v178
    %v219 = vunpack.c.h.b16 %v178
    %v220 = vunpack.c.l.b16 %v179
    %v221 = vunpack.c.h.b16 %v179
    %v222 = vunpack.c.l.b16 %v180
    %v223 = vunpack.c.h.b16 %v180
    %v224 = vunpack.c.l.b16 %v181
    %v225 = vunpack.c.h.b16 %v181
    %v226 = vunpack.c.l.b16 %v182
    %v227 = vunpack.c.h.b16 %v182
    %v228 = vunpack.c.l.b16 %v183
    %v229 = vunpack.c.h.b16 %v183
    %v230 = vunpack.c.l.b16 %v184
    %v231 = vunpack.c.h.b16 %v184
    %v232 = vunpack.c.l.b16 %v185
    %v233 = vunpack.c.h.b16 %v185
    %v234 = vpack.c.b16 %v206, %v202
    %v235 = vpack.c.b16 %v207, %v203
    %v236 = vpack.c.b16 %v208, %v204
    %v237 = vpack.c.b16 %v209, %v205
    %v238 = vpack.c.b16 %v214, %v210
    %v239 = vpack.c.b16 %v215, %v211
    %v240 = vpack.c.b16 %v216, %v212
    %v241 = vpack.c.b16 %v217, %v213
    %v242 = vpack.c.b16 %v222, %v218
    %v243 = vpack.c.b16 %v223, %v219
    %v244 = vpack.c.b16 %v224, %v220
    %v245 = vpack.c.b16 %v225, %v221
    %v246 = vpack.c.b16 %v230, %v226
    %v247 = vpack.c.b16 %v231, %v227
    %v248 = vpack.c.b16 %v232, %v228
    %v249 = vpack.c.b16 %v233, %v229
    %vm266 = vcmask 523264
    %v268 = vsel %vm266, %v80, 0
    %270 = vmatprep.subr.bf16.mxu0 %v235
    %271 = vmatpush1.bf16.msra.mxu0 %v234
    %272 = vmatprep.subr.bf16.mxu0 %v239
    %273 = vmatpush1.bf16.msra.mxu0 %v238
    %274 = vmatprep.subr.bf16.mxu0 %v243
    %275 = vmatpush1.bf16.msra.mxu0 %v242
    %276 = vmatprep.subr.bf16.mxu0 %v247
    %277 = vmatpush1.bf16.msra.mxu0 %v246
    %278 = vmatprep.subr.bf16.mxu0 0
    %279 = vmatpush1.bf16.msra.mxu0 0
    %280 = vmatprep.subr.bf16.mxu0 0
    %281 = vmatpush1.bf16.msra.mxu0 0
    %282 = vmatprep.subr.bf16.mxu0 0
    %283 = vmatpush1.bf16.msra.mxu0 0
    %284 = vmatprep.subr.bf16.mxu0 0
    %285 = vmatpush1.bf16.msra.mxu0 0
    %286 = vmatprep.subr.bf16.mxu0 0
    %287 = vmatpush1.bf16.msra.mxu0 0
    %288 = vmatprep.subr.bf16.mxu0 0
    %289 = vmatpush1.bf16.msra.mxu0 0
    %290 = vmatprep.subr.bf16.mxu0 0
    %291 = vmatpush1.bf16.msra.mxu0 0
    %292 = vmatprep.subr.bf16.mxu0 0
    %293 = vmatpush1.bf16.msra.mxu0 0
    %294 = vmatprep.subr.bf16.mxu0 0
    %295 = vmatpush1.bf16.msra.mxu0 0
    %296 = vmatprep.subr.bf16.mxu0 0
    %297 = vmatpush1.bf16.msra.mxu0 0
    %298 = vmatprep.subr.bf16.mxu0 0
    %299 = vmatpush1.bf16.msra.mxu0 0
    %300 = vmatprep.subr.bf16.mxu0 0
    %301 = vmatpush1.bf16.msra.mxu0 0
    %302 = vmatprep.mubr.bf16.mxu0 0
    %303 = vmatmul.mubr.bf16.gmra.mrb[0].mxu0 %v268
    %v304 = vpop.f32.mrb[0].mxu0
    %v305 = vadd.f32 0.0, %v304
    %v306 = vpop.f32.mrb[0].mxu0
    %v307 = vadd.f32 0.0, %v306
    %v308 = vpop.f32.mrb[0].mxu0
    %v309 = vadd.f32 0.0, %v308
    %v310 = vpop.f32.mrb[0].mxu0
    %v311 = vadd.f32 0.0, %v310
    %312 = vdwg.mxu0
    %313 = vmatprep.subr.bf16.mxu0 %v237
    %314 = vmatpush1.bf16.msra.mxu0 %v236
    %315 = vmatprep.subr.bf16.mxu0 %v241
    %316 = vmatpush1.bf16.msra.mxu0 %v240
    %317 = vmatprep.subr.bf16.mxu0 %v245
    %318 = vmatpush1.bf16.msra.mxu0 %v244
    %319 = vmatprep.subr.bf16.mxu0 %v249
    %320 = vmatpush1.bf16.msra.mxu0 %v248
    %321 = vmatprep.subr.bf16.mxu0 0
    %322 = vmatpush1.bf16.msra.mxu0 0
    %323 = vmatprep.subr.bf16.mxu0 0
    %324 = vmatpush1.bf16.msra.mxu0 0
    %325 = vmatprep.subr.bf16.mxu0 0
    %326 = vmatpush1.bf16.msra.mxu0 0
    %327 = vmatprep.subr.bf16.mxu0 0
    %328 = vmatpush1.bf16.msra.mxu0 0
    %329 = vmatprep.subr.bf16.mxu0 0
    %330 = vmatpush1.bf16.msra.mxu0 0
    %331 = vmatprep.subr.bf16.mxu0 0
    %332 = vmatpush1.bf16.msra.mxu0 0
    %333 = vmatprep.subr.bf16.mxu0 0
    %334 = vmatpush1.bf16.msra.mxu0 0
    %335 = vmatprep.subr.bf16.mxu0 0
    %336 = vmatpush1.bf16.msra.mxu0 0
    %337 = vmatprep.subr.bf16.mxu0 0
    %338 = vmatpush1.bf16.msra.mxu0 0
    %339 = vmatprep.subr.bf16.mxu0 0
    %340 = vmatpush1.bf16.msra.mxu0 0
    %341 = vmatprep.subr.bf16.mxu0 0
    %342 = vmatpush1.bf16.msra.mxu0 0
    %343 = vmatprep.subr.bf16.mxu0 0
    %344 = vmatpush1.bf16.msra.mxu0 0
    %345 = vmatprep.mubr.bf16.mxu0 0
    %346 = vmatmul.mubr.bf16.gmra.mrb[0].mxu0 %v268
    %v347 = vpop.f32.mrb[0].mxu0
    %v348 = vadd.f32 0.0, %v347
    %v349 = vpop.f32.mrb[0].mxu0
    %v350 = vadd.f32 0.0, %v349
    %v351 = vpop.f32.mrb[0].mxu0
    %v352 = vadd.f32 0.0, %v351
    %v353 = vpop.f32.mrb[0].mxu0
    %v354 = vadd.f32 0.0, %v353
    %355 = vdwg.mxu0
    %v388 = vunpack.c.l.b16 %v138
    %v389 = vunpack.c.h.b16 %v138
    %v390 = vunpack.c.l.b16 %v139
    %v391 = vunpack.c.h.b16 %v139
    %v392 = vunpack.c.l.b16 %v140
    %v393 = vunpack.c.h.b16 %v140
    %v394 = vunpack.c.l.b16 %v141
    %v395 = vunpack.c.h.b16 %v141
    %v396 = vunpack.c.l.b16 %v142
    %v397 = vunpack.c.h.b16 %v142
    %v398 = vunpack.c.l.b16 %v143
    %v399 = vunpack.c.h.b16 %v143
    %v400 = vunpack.c.l.b16 %v144
    %v401 = vunpack.c.h.b16 %v144
    %v402 = vunpack.c.l.b16 %v145
    %v403 = vunpack.c.h.b16 %v145
    %v404 = vunpack.c.l.b16 %v146
    %v405 = vunpack.c.h.b16 %v146
    %v406 = vunpack.c.l.b16 %v147
    %v407 = vunpack.c.h.b16 %v147
    %v408 = vunpack.c.l.b16 %v148
    %v409 = vunpack.c.h.b16 %v148
    %v410 = vunpack.c.l.b16 %v149
    %v411 = vunpack.c.h.b16 %v149
    %v412 = vunpack.c.l.b16 %v150
    %v413 = vunpack.c.h.b16 %v150
    %v414 = vunpack.c.l.b16 %v151
    %v415 = vunpack.c.h.b16 %v151
    %v416 = vunpack.c.l.b16 %v152
    %v417 = vunpack.c.h.b16 %v152
    %v418 = vunpack.c.l.b16 %v153
    %v419 = vunpack.c.h.b16 %v153
    %v420 = vunpack.c.l.b16 %v154
    %v421 = vunpack.c.h.b16 %v154
    %v422 = vunpack.c.l.b16 %v155
    %v423 = vunpack.c.h.b16 %v155
    %v424 = vunpack.c.l.b16 %v156
    %v425 = vunpack.c.h.b16 %v156
    %v426 = vunpack.c.l.b16 %v157
    %v427 = vunpack.c.h.b16 %v157
    %v428 = vunpack.c.l.b16 %v158
    %v429 = vunpack.c.h.b16 %v158
    %v430 = vunpack.c.l.b16 %v159
    %v431 = vunpack.c.h.b16 %v159
    %v432 = vunpack.c.l.b16 %v160
    %v433 = vunpack.c.h.b16 %v160
    %v434 = vunpack.c.l.b16 %v161
    %v435 = vunpack.c.h.b16 %v161
    %v436 = vunpack.c.l.b16 %v162
    %v437 = vunpack.c.h.b16 %v162
    %v438 = vunpack.c.l.b16 %v163
    %v439 = vunpack.c.h.b16 %v163
    %v440 = vunpack.c.l.b16 %v164
    %v441 = vunpack.c.h.b16 %v164
    %v442 = vunpack.c.l.b16 %v165
    %v443 = vunpack.c.h.b16 %v165
    %v444 = vunpack.c.l.b16 %v166
    %v445 = vunpack.c.h.b16 %v166
    %v446 = vunpack.c.l.b16 %v167
    %v447 = vunpack.c.h.b16 %v167
    %v448 = vunpack.c.l.b16 %v168
    %v449 = vunpack.c.h.b16 %v168
    %v450 = vunpack.c.l.b16 %v169
    %v451 = vunpack.c.h.b16 %v169
    %v452 = vpack.c.b16 %v392, %v388
    %v453 = vpack.c.b16 %v393, %v389
    %v454 = vpack.c.b16 %v394, %v390
    %v455 = vpack.c.b16 %v395, %v391
    %v456 = vpack.c.b16 %v400, %v396
    %v457 = vpack.c.b16 %v401, %v397
    %v458 = vpack.c.b16 %v402, %v398
    %v459 = vpack.c.b16 %v403, %v399
    %v460 = vpack.c.b16 %v408, %v404
    %v461 = vpack.c.b16 %v409, %v405
    %v462 = vpack.c.b16 %v410, %v406
    %v463 = vpack.c.b16 %v411, %v407
    %v464 = vpack.c.b16 %v416, %v412
    %v465 = vpack.c.b16 %v417, %v413
    %v466 = vpack.c.b16 %v418, %v414
    %v467 = vpack.c.b16 %v419, %v415
    %v468 = vpack.c.b16 %v424, %v420
    %v469 = vpack.c.b16 %v425, %v421
    %v470 = vpack.c.b16 %v426, %v422
    %v471 = vpack.c.b16 %v427, %v423
    %v472 = vpack.c.b16 %v432, %v428
    %v473 = vpack.c.b16 %v433, %v429
    %v474 = vpack.c.b16 %v434, %v430
    %v475 = vpack.c.b16 %v435, %v431
    %v476 = vpack.c.b16 %v440, %v436
    %v477 = vpack.c.b16 %v441, %v437
    %v478 = vpack.c.b16 %v442, %v438
    %v479 = vpack.c.b16 %v443, %v439
    %v480 = vpack.c.b16 %v448, %v444
    %v481 = vpack.c.b16 %v449, %v445
    %v482 = vpack.c.b16 %v450, %v446
    %v483 = vpack.c.b16 %v451, %v447
    %516 = vmatprep.subr.bf16.mxu0 %v453
    %517 = vmatpush1.bf16.msra.mxu0 %v452
    %518 = vmatprep.subr.bf16.mxu0 %v457
    %519 = vmatpush1.bf16.msra.mxu0 %v456
    %520 = vmatprep.subr.bf16.mxu0 %v461
    %521 = vmatpush1.bf16.msra.mxu0 %v460
    %522 = vmatprep.subr.bf16.mxu0 %v465
    %523 = vmatpush1.bf16.msra.mxu0 %v464
    %524 = vmatprep.subr.bf16.mxu0 %v469
    %525 = vmatpush1.bf16.msra.mxu0 %v468
    %526 = vmatprep.subr.bf16.mxu0 %v473
    %527 = vmatpush1.bf16.msra.mxu0 %v472
    %528 = vmatprep.subr.bf16.mxu0 %v477
    %529 = vmatpush1.bf16.msra.mxu0 %v476
    %530 = vmatprep.subr.bf16.mxu0 %v481
    %531 = vmatpush1.bf16.msra.mxu0 %v480
    %532 = vmatprep.subr.bf16.mxu0 0
    %533 = vmatpush1.bf16.msra.mxu0 0
    %534 = vmatprep.subr.bf16.mxu0 0
    %535 = vmatpush1.bf16.msra.mxu0 0
    %536 = vmatprep.subr.bf16.mxu0 0
    %537 = vmatpush1.bf16.msra.mxu0 0
    %538 = vmatprep.subr.bf16.mxu0 0
    %539 = vmatpush1.bf16.msra.mxu0 0
    %540 = vmatprep.subr.bf16.mxu0 0
    %541 = vmatpush1.bf16.msra.mxu0 0
    %542 = vmatprep.subr.bf16.mxu0 0
    %543 = vmatpush1.bf16.msra.mxu0 0
    %544 = vmatprep.subr.bf16.mxu0 0
    %545 = vmatpush1.bf16.msra.mxu0 0
    %546 = vmatprep.subr.bf16.mxu0 0
    %547 = vmatpush1.bf16.msra.mxu0 0
    %548 = vmatprep.mubr.bf16.mxu0 0
    %549 = vmatmul.mubr.bf16.gmra.mrb[0].mxu0 %v137
    %v550 = vpop.f32.mrb[0].mxu0
    %v551 = vadd.f32 %v305, %v550
    %v552 = vpop.f32.mrb[0].mxu0
    %v553 = vadd.f32 %v307, %v552
    %v554 = vpop.f32.mrb[0].mxu0
    %v555 = vadd.f32 %v309, %v554
    %v556 = vpop.f32.mrb[0].mxu0
    %v557 = vadd.f32 %v311, %v556
    %558 = vdwg.mxu0
    %559 = vmatprep.subr.bf16.mxu0 %v455
    %560 = vmatpush1.bf16.msra.mxu0 %v454
    %561 = vmatprep.subr.bf16.mxu0 %v459
    %562 = vmatpush1.bf16.msra.mxu0 %v458
    %563 = vmatprep.subr.bf16.mxu0 %v463
    %564 = vmatpush1.bf16.msra.mxu0 %v462
    %565 = vmatprep.subr.bf16.mxu0 %v467
    %566 = vmatpush1.bf16.msra.mxu0 %v466
    %567 = vmatprep.subr.bf16.mxu0 %v471
    %568 = vmatpush1.bf16.msra.mxu0 %v470
    %569 = vmatprep.subr.bf16.mxu0 %v475
    %570 = vmatpush1.bf16.msra.mxu0 %v474
    %571 = vmatprep.subr.bf16.mxu0 %v479
    %572 = vmatpush1.bf16.msra.mxu0 %v478
    %573 = vmatprep.subr.bf16.mxu0 %v483
    %574 = vmatpush1.bf16.msra.mxu0 %v482
    %575 = vmatprep.subr.bf16.mxu0 0
    %576 = vmatpush1.bf16.msra.mxu0 0
    %577 = vmatprep.subr.bf16.mxu0 0
    %578 = vmatpush1.bf16.msra.mxu0 0
    %579 = vmatprep.subr.bf16.mxu0 0
    %580 = vmatpush1.bf16.msra.mxu0 0
    %581 = vmatprep.subr.bf16.mxu0 0
    %582 = vmatpush1.bf16.msra.mxu0 0
    %583 = vmatprep.subr.bf16.mxu0 0
    %584 = vmatpush1.bf16.msra.mxu0 0
    %585 = vmatprep.subr.bf16.mxu0 0
    %586 = vmatpush1.bf16.msra.mxu0 0
    %587 = vmatprep.subr.bf16.mxu0 0
    %588 = vmatpush1.bf16.msra.mxu0 0
    %589 = vmatprep.subr.bf16.mxu0 0
    %590 = vmatpush1.bf16.msra.mxu0 0
    %591 = vmatprep.mubr.bf16.mxu0 0
    %592 = vmatmul.mubr.bf16.gmra.mrb[0].mxu0 %v137
    %v593 = vpop.f32.mrb[0].mxu0
    %v594 = vadd.f32 %v348, %v593
    %v595 = vpop.f32.mrb[0].mxu0
    %v596 = vadd.f32 %v350, %v595
    %v597 = vpop.f32.mrb[0].mxu0
    %v598 = vadd.f32 %v352, %v597
    %v599 = vpop.f32.mrb[0].mxu0
    %v600 = vadd.f32 %v354, %v599
    %601 = vdwg.mxu0
    %v602 = vmax.f32 %v551, 0.0
    %v603 = vmax.f32 %v553, 0.0
    %v604 = vmax.f32 %v594, 0.0
    %v605 = vmax.f32 %v596, 0.0
    %v606 = vmax.f32 %v555, 0.0
    %v607 = vmax.f32 %v557, 0.0
    %v608 = vmax.f32 %v598, 0.0
    %v609 = vmax.f32 %v600, 0.0
    %v610 = vpack.c.bf16 %v606, %v602
    %v611 = vpack.c.bf16 %v607, %v603
    %v612 = vpack.c.bf16 %v608, %v604
    %v613 = vpack.c.bf16 %v609, %v605
    %v614 = vld [vmem:[#allocation8] sm:$0xf]
    %v615 = vld [vmem:[#allocation8 + $0x4] sm:$0xf]
    %v616 = vld [vmem:[#allocation8 + $0x8] sm:$0xf]
    %v617 = vld [vmem:[#allocation8 + $0xc] sm:$0xf]
    %v618 = vld [vmem:[#allocation8 + $0x10] sm:$0xf]
    %v619 = vld [vmem:[#allocation8 + $0x14] sm:$0xf]
    %v620 = vld [vmem:[#allocation8 + $0x18] sm:$0xf]
    %v621 = vld [vmem:[#allocation8 + $0x1c] sm:$0xf]
    %v622 = vld [vmem:[#allocation8 + $0x20] sm:$0xf]
    %v623 = vld [vmem:[#allocation8 + $0x24] sm:$0xf]
    %v624 = vld [vmem:[#allocation8 + $0x28] sm:$0xf]
    %v625 = vld [vmem:[#allocation8 + $0x2c] sm:$0xf]
    %v626 = vld [vmem:[#allocation8 + $0x30] sm:$0xf]
    %v627 = vld [vmem:[#allocation8 + $0x34] sm:$0xf]
    %v628 = vld [vmem:[#allocation8 + $0x38] sm:$0xf]
    %v629 = vld [vmem:[#allocation8 + $0x3c] sm:$0xf]
    %v630 = vld [vmem:[#allocation8 + $0x40] sm:$0xf]
    %v631 = vld [vmem:[#allocation8 + $0x44] sm:$0xf]
    %v632 = vld [vmem:[#allocation8 + $0x48] sm:$0xf]
    %v633 = vld [vmem:[#allocation8 + $0x4c] sm:$0xf]
    %v634 = vld [vmem:[#allocation8 + $0x50] sm:$0xf]
    %v635 = vld [vmem:[#allocation8 + $0x54] sm:$0xf]
    %v636 = vld [vmem:[#allocation8 + $0x58] sm:$0xf]
    %v637 = vld [vmem:[#allocation8 + $0x5c] sm:$0xf]
    %v638 = vld [vmem:[#allocation8 + $0x60] sm:$0xf]
    %v639 = vld [vmem:[#allocation8 + $0x64] sm:$0xf]
    %v640 = vld [vmem:[#allocation8 + $0x68] sm:$0xf]
    %v641 = vld [vmem:[#allocation8 + $0x6c] sm:$0xf]
    %v642 = vld [vmem:[#allocation8 + $0x70] sm:$0xf]
    %v643 = vld [vmem:[#allocation8 + $0x74] sm:$0xf]
    %v644 = vld [vmem:[#allocation8 + $0x78] sm:$0xf]
    %v645 = vld [vmem:[#allocation8 + $0x7c] sm:$0xf]
    %v646 = vld [vmem:[#allocation8 + $0x80] sm:$0xf]
    %v647 = vld [vmem:[#allocation8 + $0x84] sm:$0xf]
    %v648 = vld [vmem:[#allocation8 + $0x88] sm:$0xf]
    %v649 = vld [vmem:[#allocation8 + $0x8c] sm:$0xf]
    %v650 = vld [vmem:[#allocation8 + $0x90] sm:$0xf]
    %v651 = vld [vmem:[#allocation8 + $0x94] sm:$0xf]
    %v652 = vld [vmem:[#allocation8 + $0x98] sm:$0xf]
    %v653 = vld [vmem:[#allocation8 + $0x9c] sm:$0xf]
    %v654 = vld [vmem:[#allocation8 + $0xa0] sm:$0xf]
    %v655 = vld [vmem:[#allocation8 + $0xa4] sm:$0xf]
    %v656 = vld [vmem:[#allocation8 + $0xa8] sm:$0xf]
    %v657 = vld [vmem:[#allocation8 + $0xac] sm:$0xf]
    %v658 = vld [vmem:[#allocation8 + $0xb0] sm:$0xf]
    %v659 = vld [vmem:[#allocation8 + $0xb4] sm:$0xf]
    %v660 = vld [vmem:[#allocation8 + $0xb8] sm:$0xf]
    %v661 = vld [vmem:[#allocation8 + $0xbc] sm:$0xf]
    %v662 = vld [vmem:[#allocation8 + $0xc0] sm:$0xf]
    %v663 = vld [vmem:[#allocation8 + $0xc4] sm:$0xf]
    %v664 = vld [vmem:[#allocation8 + $0xc8] sm:$0xf]
    %v665 = vld [vmem:[#allocation8 + $0xcc] sm:$0xf]
    %v666 = vld [vmem:[#allocation8 + $0xd0] sm:$0xf]
    %v667 = vld [vmem:[#allocation8 + $0xd4] sm:$0xf]
    %v668 = vld [vmem:[#allocation8 + $0xd8] sm:$0xf]
    %v669 = vld [vmem:[#allocation8 + $0xdc] sm:$0xf]
    %v670 = vld [vmem:[#allocation8 + $0xe0] sm:$0xf]
    %v671 = vld [vmem:[#allocation8 + $0xe4] sm:$0xf]
    %v672 = vld [vmem:[#allocation8 + $0xe8] sm:$0xf]
    %v673 = vld [vmem:[#allocation8 + $0xec] sm:$0xf]
    %v674 = vld [vmem:[#allocation8 + $0xf0] sm:$0xf]
    %v675 = vld [vmem:[#allocation8 + $0xf4] sm:$0xf]
    %v676 = vld [vmem:[#allocation8 + $0xf8] sm:$0xf]
    %v677 = vld [vmem:[#allocation8 + $0xfc] sm:$0xf]
    %v678 = vlaneseq
    %v679 = vshrl.u32 %v678, 7
    %v680 = vsub.s32 5, %v679
    %v681 = vrot.slane %v74, %v680
    %v746 = vunpack.c.l.b16 %v614
    %v747 = vunpack.c.l.b16 %v615
    %v748 = vunpack.c.l.b16 %v616
    %v749 = vunpack.c.l.b16 %v617
    %v750 = vunpack.c.l.b16 %v618
    %v751 = vunpack.c.l.b16 %v619
    %v752 = vunpack.c.l.b16 %v620
    %v753 = vunpack.c.l.b16 %v621
    %v754 = vunpack.c.l.b16 %v622
    %v755 = vunpack.c.l.b16 %v623
    %v756 = vunpack.c.l.b16 %v624
    %v757 = vunpack.c.l.b16 %v625
    %v758 = vunpack.c.l.b16 %v626
    %v759 = vunpack.c.l.b16 %v627
    %v760 = vunpack.c.l.b16 %v628
    %v761 = vunpack.c.l.b16 %v629
    %v762 = vunpack.c.l.b16 %v630
    %v763 = vunpack.c.l.b16 %v631
    %v764 = vunpack.c.l.b16 %v632
    %v765 = vunpack.c.l.b16 %v633
    %v766 = vunpack.c.l.b16 %v634
    %v767 = vunpack.c.l.b16 %v635
    %v768 = vunpack.c.l.b16 %v636
    %v769 = vunpack.c.l.b16 %v637
    %v770 = vunpack.c.l.b16 %v638
    %v771 = vunpack.c.l.b16 %v639
    %v772 = vunpack.c.l.b16 %v640
    %v773 = vunpack.c.l.b16 %v641
    %v774 = vunpack.c.l.b16 %v642
    %v775 = vunpack.c.l.b16 %v643
    %v776 = vunpack.c.l.b16 %v644
    %v777 = vunpack.c.l.b16 %v645
    %v778 = vunpack.c.l.b16 %v646
    %v779 = vunpack.c.l.b16 %v647
    %v780 = vunpack.c.l.b16 %v648
    %v781 = vunpack.c.l.b16 %v649
    %v782 = vunpack.c.l.b16 %v650
    %v783 = vunpack.c.l.b16 %v651
    %v784 = vunpack.c.l.b16 %v652
    %v785 = vunpack.c.l.b16 %v653
    %v786 = vunpack.c.l.b16 %v654
    %v787 = vunpack.c.l.b16 %v655
    %v788 = vunpack.c.l.b16 %v656
    %v789 = vunpack.c.l.b16 %v657
    %v790 = vunpack.c.l.b16 %v658
    %v791 = vunpack.c.l.b16 %v659
    %v792 = vunpack.c.l.b16 %v660
    %v793 = vunpack.c.l.b16 %v661
    %v794 = vunpack.c.l.b16 %v662
    %v795 = vunpack.c.l.b16 %v663
    %v796 = vunpack.c.l.b16 %v664
    %v797 = vunpack.c.l.b16 %v665
    %v798 = vunpack.c.l.b16 %v666
    %v799 = vunpack.c.l.b16 %v667
    %v800 = vunpack.c.l.b16 %v668
    %v801 = vunpack.c.l.b16 %v669
    %v802 = vunpack.c.l.b16 %v670
    %v803 = vunpack.c.l.b16 %v671
    %v804 = vunpack.c.l.b16 %v672
    %v805 = vunpack.c.l.b16 %v673
    %v806 = vunpack.c.l.b16 %v674
    %v807 = vunpack.c.l.b16 %v675
    %v808 = vunpack.c.l.b16 %v676
    %v809 = vunpack.c.l.b16 %v677
    %v810 = vpack.c.b16 %v747, %v746
    %v811 = vpack.c.b16 %v749, %v748
    %v812 = vpack.c.b16 %v751, %v750
    %v813 = vpack.c.b16 %v753, %v752
    %v814 = vpack.c.b16 %v755, %v754
    %v815 = vpack.c.b16 %v757, %v756
    %v816 = vpack.c.b16 %v759, %v758
    %v817 = vpack.c.b16 %v761, %v760
    %v818 = vpack.c.b16 %v763, %v762
    %v819 = vpack.c.b16 %v765, %v764
    %v820 = vpack.c.b16 %v767, %v766
    %v821 = vpack.c.b16 %v769, %v768
    %v822 = vpack.c.b16 %v771, %v770
    %v823 = vpack.c.b16 %v773, %v772
    %v824 = vpack.c.b16 %v775, %v774
    %v825 = vpack.c.b16 %v777, %v776
    %v826 = vpack.c.b16 %v779, %v778
    %v827 = vpack.c.b16 %v781, %v780
    %v828 = vpack.c.b16 %v783, %v782
    %v829 = vpack.c.b16 %v785, %v784
    %v830 = vpack.c.b16 %v787, %v786
    %v831 = vpack.c.b16 %v789, %v788
    %v832 = vpack.c.b16 %v791, %v790
    %v833 = vpack.c.b16 %v793, %v792
    %v834 = vpack.c.b16 %v795, %v794
    %v835 = vpack.c.b16 %v797, %v796
    %v836 = vpack.c.b16 %v799, %v798
    %v837 = vpack.c.b16 %v801, %v800
    %v838 = vpack.c.b16 %v803, %v802
    %v839 = vpack.c.b16 %v805, %v804
    %v840 = vpack.c.b16 %v807, %v806
    %v841 = vpack.c.b16 %v809, %v808
    %874 = vmatprep.subr.bf16.mxu0 0
    %875 = vmatpush1.bf16.msra.mxu0 %v810
    %876 = vmatprep.subr.bf16.mxu0 0
    %877 = vmatpush1.bf16.msra.mxu0 %v811
    %878 = vmatprep.subr.bf16.mxu0 0
    %879 = vmatpush1.bf16.msra.mxu0 %v812
    %880 = vmatprep.subr.bf16.mxu0 0
    %881 = vmatpush1.bf16.msra.mxu0 %v813
    %882 = vmatprep.subr.bf16.mxu0 0
    %883 = vmatpush1.bf16.msra.mxu0 %v814
    %884 = vmatprep.subr.bf16.mxu0 0
    %885 = vmatpush1.bf16.msra.mxu0 %v815
    %886 = vmatprep.subr.bf16.mxu0 0
    %887 = vmatpush1.bf16.msra.mxu0 %v816
    %888 = vmatprep.subr.bf16.mxu0 0
    %889 = vmatpush1.bf16.msra.mxu0 %v817
    %890 = vmatprep.subr.bf16.mxu0 0
    %891 = vmatpush1.bf16.msra.mxu0 %v818
    %892 = vmatprep.subr.bf16.mxu0 0
    %893 = vmatpush1.bf16.msra.mxu0 %v819
    %894 = vmatprep.subr.bf16.mxu0 0
    %895 = vmatpush1.bf16.msra.mxu0 %v820
    %896 = vmatprep.subr.bf16.mxu0 0
    %897 = vmatpush1.bf16.msra.mxu0 %v821
    %898 = vmatprep.subr.bf16.mxu0 0
    %899 = vmatpush1.bf16.msra.mxu0 %v822
    %900 = vmatprep.subr.bf16.mxu0 0
    %901 = vmatpush1.bf16.msra.mxu0 %v823
    %902 = vmatprep.subr.bf16.mxu0 0
    %903 = vmatpush1.bf16.msra.mxu0 %v824
    %904 = vmatprep.subr.bf16.mxu0 0
    %905 = vmatpush1.bf16.msra.mxu0 %v825
    %906 = vmatprep.mubr.bf16.mxu0 %v611
    %907 = vmatmul.mubr.bf16.gmra.mrb[0].mxu0 %v610
    %v908 = vpop.f32.mrb[0].mxu0
    %v909 = vadd.f32 %v681, %v908
    %v910 = vpop.f32.mrb[0].mxu0
    %v911 = vpop.f32.mrb[0].mxu0
    %v912 = vadd.f32 %v681, %v911
    %v913 = vpop.f32.mrb[0].mxu0
    %914 = vdwg.mxu0
    %915 = vmatprep.subr.bf16.mxu0 0
    %916 = vmatpush1.bf16.msra.mxu0 %v826
    %917 = vmatprep.subr.bf16.mxu0 0
    %918 = vmatpush1.bf16.msra.mxu0 %v827
    %919 = vmatprep.subr.bf16.mxu0 0
    %920 = vmatpush1.bf16.msra.mxu0 %v828
    %921 = vmatprep.subr.bf16.mxu0 0
    %922 = vmatpush1.bf16.msra.mxu0 %v829
    %923 = vmatprep.subr.bf16.mxu0 0
    %924 = vmatpush1.bf16.msra.mxu0 %v830
    %925 = vmatprep.subr.bf16.mxu0 0
    %926 = vmatpush1.bf16.msra.mxu0 %v831
    %927 = vmatprep.subr.bf16.mxu0 0
    %928 = vmatpush1.bf16.msra.mxu0 %v832
    %929 = vmatprep.subr.bf16.mxu0 0
    %930 = vmatpush1.bf16.msra.mxu0 %v833
    %931 = vmatprep.subr.bf16.mxu0 0
    %932 = vmatpush1.bf16.msra.mxu0 %v834
    %933 = vmatprep.subr.bf16.mxu0 0
    %934 = vmatpush1.bf16.msra.mxu0 %v835
    %935 = vmatprep.subr.bf16.mxu0 0
    %936 = vmatpush1.bf16.msra.mxu0 %v836
    %937 = vmatprep.subr.bf16.mxu0 0
    %938 = vmatpush1.bf16.msra.mxu0 %v837
    %939 = vmatprep.subr.bf16.mxu0 0
    %940 = vmatpush1.bf16.msra.mxu0 %v838
    %941 = vmatprep.subr.bf16.mxu0 0
    %942 = vmatpush1.bf16.msra.mxu0 %v839
    %943 = vmatprep.subr.bf16.mxu0 0
    %944 = vmatpush1.bf16.msra.mxu0 %v840
    %945 = vmatprep.subr.bf16.mxu0 0
    %946 = vmatpush1.bf16.msra.mxu0 %v841
    %947 = vmatprep.mubr.bf16.mxu0 %v613
    %948 = vmatmul.mubr.bf16.gmra.mrb[0].mxu0 %v612
    %v949 = vpop.f32.mrb[0].mxu0
    %v950 = vadd.f32 %v909, %v949
    %v951 = vpop.f32.mrb[0].mxu0
    %v952 = vpop.f32.mrb[0].mxu0
    %v953 = vadd.f32 %v912, %v952
    %v954 = vpop.f32.mrb[0].mxu0
    %955 = vdwg.mxu0
    %956 = vst [vmem:[#allocation10] sm:$0xff] %v950
    %957 = vst [vmem:[#allocation10 + $0x8] sm:$0xff] %v953
    // Predicated region
    $region34: #{tpu_custom_call.1} parent=1 // pred_check
      _
    $region35: #{tpu_custom_call.1} parent=1 // pred_check_branch
      %959 = sbr.rel (0) target = $region37
    $region36: #{tpu_custom_call.1} parent=1 // pred_region
      %s961 = ssub.s32 256, 256
      %962 = vsyncadd [#allocation4], %s961
      %s963 = sshll.u32 [#allocation10], 4
      %s964 = int_to_ptr.vmem [resolvable:$true] %s963
      %969 = dma.vmem_to_hbm [thread:$0]  %s964, 256, %s4, [#allocation4], 128, 128, 8
    $region37: #{tpu_custom_call.1} parent=1 // pred_fallthru
      _
    // Predicated region
    $region38: #{tpu_custom_call.1} parent=1 // pred_check
      _
    $region39: #{tpu_custom_call.1} parent=1 // pred_check_branch
      %971 = sbr.rel (0) target = $region41
    $region40: #{tpu_custom_call.1} parent=1 // pred_region
      %972 = dma.done [#allocation4], 256
    $region41: #{tpu_custom_call.1} parent=1 // pred_fallthru
      _
    %973 = vsyncpa [#allocation3], 1
    %974 = vsyncpa [#allocation6], 1
    %975 = vsyncpa [#allocation9], 1
    %976 = vsyncpa [#allocation4], 1

</llo_original>
